<compile_context>
chip_gen: v7x
topology: tpu7x:2x2x1
jax: 0.10.0
libtpu: 0.0.40
codegen_flags: <defaults>
</compile_context>

<pallas_src>
import jax
import jax.numpy as jnp
from jax import lax
from jax.experimental import pallas as pl
from jax.experimental.pallas import tpu as pltpu


def _cgmm_kernel(x_ref, h_ref, q_ref, b_ref, lik_ref, post_ref):
    # x_ref   : (1, TN)          int32 node labels, lane-dense in N
    # h_ref   : (n_gen, C, TN)   aggregated neighbor hidden states
    # q_ref   : (n_gen, C, C)    softmax(lambda_Q[:, :, g], axis=0), stacked over g
    # b_ref   : (n_gen, C, M)    softmax(lambda_B[:, :, g], axis=1), stacked over g
    # lik_ref : (n_gen, TN)      log-likelihood output
    # post_ref: (n_gen, C, TN)   posterior_i output
    n_gen, C, _ = h_ref.shape
    M = b_ref.shape[-1]

    labels = x_ref[...]                                           # (1, TN) int32
    one_hot = (lax.broadcasted_iota(jnp.int32, (M,) + labels.shape[1:], 0)
               == labels).astype(jnp.float32)                     # (M, TN), exact 0/1

    lik_rows = []
    for g in range(n_gen):                                        # unrolled; n_gen is small
        # bx[i, n] = B_g[i, x[n]]  (one-hot gather as an MXU matmul over M)
        bx = lax.dot_general(b_ref[g], one_hot, (((1,), (0,)), ((), ())),
                             preferred_element_type=jnp.float32)  # (C, TN)
        # s[i, n] = sum_l Q_g[i, l] * h_aggr[l, n]
        s = lax.dot_general(q_ref[g], h_ref[g], (((1,), (0,)), ((), ())),
                            preferred_element_type=jnp.float32)   # (C, TN)
        u = bx * s                                                # sum_l unnorm (w/o eps)
        z = jnp.sum(u, axis=0, keepdims=True) + (C * C) * 1e-12   # (1, TN), full sum + eps
        inv_z = 1.0 / z                                           # one reciprocal row
        post_ref[g] = (u + C * 1e-12) * inv_z
        lik_rows.append(jnp.log(z))
    lik_ref[...] = jnp.concatenate(lik_rows, axis=0)              # single dense store


def cgmm_softmax_params(lambda_Q, lambda_B):
    """Per-generator softmaxes, returned in kernel-native (n_gen, ...) layout."""
    q = jax.nn.softmax(lambda_Q.astype(jnp.float32), axis=0)      # (C, C, n_gen)
    b = jax.nn.softmax(lambda_B.astype(jnp.float32), axis=1)      # (C, M, n_gen)
    return jnp.transpose(q, (2, 0, 1)), jnp.transpose(b, (2, 0, 1))


def cgmm_layer_forward_native(x, h_aggr_t, q_t, b_t, *, tile_n=8192,
                              vmem_budget_bytes=8 * 1024 * 1024):
    """Kernel-native entry point (lane-dense layout, no transposes).

    x        : (N,) int        node labels
    h_aggr_t : (n_gen, C, N)   aggregated neighbor hidden states
    q_t, b_t : (n_gen, C, C) / (n_gen, C, M)  already-softmaxed parameters
    Returns (likelihood (n_gen, N), posterior_i (n_gen, C, N)) in float32.
    Stacked CGMM layers should stay in this layout to avoid full-array transposes.
    """
    n_gen, C, N = h_aggr_t.shape
    M = b_t.shape[-1]

    # Lane-tile size: as large as a conservative double-buffered VMEM budget allows.
    bytes_per_col = 2 * (4 * n_gen * C      # h in
                         + 4 * n_gen * C    # posterior out
                         + 4 * n_gen        # likelihood out
                         + 4)               # labels in
    tn_budget = max(128, (vmem_budget_bytes // bytes_per_col) // 128 * 128)
    n_ceil = pl.cdiv(max(N, 1), 128) * 128
    tn = int(min(tile_n, tn_budget, n_ceil))
    n_pad = pl.cdiv(N, tn) * tn
    n_tiles = n_pad // tn

    x_pad = jnp.pad(x.astype(jnp.int32), (0, n_pad - N)).reshape(1, n_pad)
    h_pad = jnp.pad(h_aggr_t.astype(jnp.float32), ((0, 0), (0, 0), (0, n_pad - N)))

    cost = pl.CostEstimate(
        flops=int(2 * n_gen * n_pad * C * (C + M) + 5 * n_gen * C * n_pad),
        transcendentals=int(2 * n_gen * n_pad),
        bytes_accessed=int(4 * n_gen * C * n_pad            # h in
                           + 4 * n_pad                      # labels in
                           + 4 * n_gen * (C + 1) * n_pad    # posterior + likelihood out
                           + 4 * n_gen * C * (C + M)),      # params
    )

    lik_t, post_t = pl.pallas_call(
        _cgmm_kernel,
        out_shape=(
            jax.ShapeDtypeStruct((n_gen, n_pad), jnp.float32),
            jax.ShapeDtypeStruct((n_gen, C, n_pad), jnp.float32),
        ),
        grid=(n_tiles,),
        in_specs=[
            pl.BlockSpec((1, tn), lambda i: (0, i)),
            pl.BlockSpec((n_gen, C, tn), lambda i: (0, 0, i)),
            pl.BlockSpec((n_gen, C, C), lambda i: (0, 0, 0)),   # params resident
            pl.BlockSpec((n_gen, C, M), lambda i: (0, 0, 0)),
        ],
        out_specs=(
            pl.BlockSpec((n_gen, tn), lambda i: (0, i)),
            pl.BlockSpec((n_gen, C, tn), lambda i: (0, 0, i)),
        ),
        compiler_params=pltpu.CompilerParams(
            dimension_semantics=("parallel",)),
        cost_estimate=cost,
    )(x_pad, h_pad, q_t, b_t)

    return lik_t[:, :N], post_t[:, :, :N]


def cgmm_layer_forward(x, prev_h, edge_index, lambda_Q, lambda_B, *, tile_n=8192):
    """PyTorch-layout wrapper. Returns (likelihood (N, n_gen), posterior_i (N, C, n_gen))."""
    N, C, n_gen = prev_h.shape
    E = edge_index.shape[1]

    # TODO(synk): scatter-mean neighbor aggregation is a data-dependent scatter;
    # kept in plain JAX (segment_sum) rather than inside the Pallas kernel.
    dst, src = edge_index[0], edge_index[1]
    agg = jax.ops.segment_sum(prev_h[src], dst, num_segments=N)           # (N, C, n_gen)
    deg = jax.ops.segment_sum(jnp.ones((E,), prev_h.dtype), dst, num_segments=N)
    agg = agg / jnp.maximum(deg, 1.0)[:, None, None]

    # Boundary layout conversion only; chained layers should use the native API
    # (cgmm_layer_forward_native) and keep (n_gen, C, N) end-to-end.
    h_t = jnp.transpose(agg, (2, 1, 0)).astype(jnp.float32)               # (n_gen, C, N)
    q_t, b_t = cgmm_softmax_params(lambda_Q, lambda_B)

    lik_t, post_t = cgmm_layer_forward_native(x, h_t, q_t, b_t, tile_n=tile_n)

    likelihood = jnp.transpose(lik_t, (1, 0))                             # (N, n_gen)
    posterior_i = jnp.transpose(post_t, (2, 1, 0))                        # (N, C, n_gen)
    return likelihood, posterior_i


def cgmm_reference(x, prev_h, edge_index, lambda_Q, lambda_B):
    """Pure-JAX transcription of InwardOutward.forward (for verification)."""
    N = prev_h.shape[0]
    dst, src = edge_index[0], edge_index[1]
    Q = jax.nn.softmax(lambda_Q, axis=0)                 # (C, C, n_gen)
    B = jax.nn.softmax(lambda_B, axis=1)                 # (C, M, n_gen)
    agg = jax.ops.segment_sum(prev_h[src], dst, num_segments=N)
    deg = jax.ops.segment_sum(jnp.ones(src.shape, prev_h.dtype), dst, num_segments=N)
    agg = agg / jnp.maximum(deg, 1.0)[:, None, None]     # (N, C, n_gen)

    B_nodes = jnp.transpose(B[:, x], (1, 0, 2))[:, :, None, :]   # (N, C, 1, n_gen)
    agg_e = agg[:, None, :, :]                                   # (N, 1, C, n_gen)
    unnorm = B_nodes * (Q[None] * agg_e) + 1e-12                 # (N, C, C, n_gen)
    Z = unnorm.sum(axis=(1, 2))                                  # (N, n_gen)
    post_il = unnorm / unnorm.sum(axis=(1, 2), keepdims=True)
    return jnp.log(Z), post_il.sum(axis=2)


if __name__ == "__main__":
    # deterministic synthetic setup (CGMMLayer(n_gen=4, C=8, M=8), N=16 nodes, E=40 edges)
    key = jax.random.PRNGKey(0)
    k1, k2, k3, k4, k5, k6 = jax.random.split(key, 6)
    N, C, M, n_gen, E = 16, 8, 8, 4, 40

    # nn.init.uniform_ -> U[0, 1)
    lambda_Q = jax.random.uniform(k1, (C, C, n_gen), dtype=jnp.float32)
    lambda_B = jax.random.uniform(k2, (C, M, n_gen), dtype=jnp.float32)

    x = jax.random.randint(k3, (N,), 0, M, dtype=jnp.int32)
    prev_h = jax.random.uniform(k4, (N, C, n_gen), dtype=jnp.float32)
    # every node gets at least one incoming edge (dst = arange plus random extras)
    dst = jnp.concatenate([jnp.arange(N, dtype=jnp.int32),
                           jax.random.randint(k5, (E - N,), 0, N, dtype=jnp.int32)])
    src = jax.random.randint(k6, (E,), 0, N, dtype=jnp.int32)
    edge_index = jnp.stack([dst, src], axis=0)           # (2, E)

    fwd = jax.jit(cgmm_layer_forward)
    lik, post = fwd(x, prev_h, edge_index, lambda_Q, lambda_B)
    jax.block_until_ready((lik, post))

    lik_ref, post_ref = cgmm_reference(x, prev_h, edge_index, lambda_Q, lambda_B)
    assert lik.shape == (N, n_gen) and post.shape == (N, C, n_gen)
    assert jnp.allclose(lik, lik_ref, rtol=1e-5, atol=1e-6)
    assert jnp.allclose(post, post_ref, rtol=1e-5, atol=1e-6)

    print("KERNEL_OK")
</pallas_src>

<mosaic_0001>
module attributes {stable_mosaic.version = 11 : i64} {
  func.func @_cgmm_kernel(%arg0: i32, %arg1: memref<1x128xi32, #tpu.memory_space<vmem>>, %arg2: memref<4x8x128xf32, #tpu.memory_space<vmem>>, %arg3: memref<4x8x8xf32, #tpu.memory_space<vmem>>, %arg4: memref<4x8x8xf32, #tpu.memory_space<vmem>>, %arg5: memref<4x128xf32, #tpu.memory_space<vmem>>, %arg6: memref<4x8x128xf32, #tpu.memory_space<vmem>>) attributes {dimension_semantics = [#tpu.dimension_semantics<parallel>], iteration_bounds = array<i64: 1>, scalar_prefetch = 0 : i64, scratch_operands = 0 : i64, tpu.core_type = #tpu.core_type<tc>, window_params = [{transform_indices = @transform_0, window_bounds = array<i64: 1, 128>}, {transform_indices = @transform_1, window_bounds = array<i64: 4, 8, 128>}, {pipeline_mode = #tpu.pipeline_mode<synchronous>, transform_indices = @transform_2, window_bounds = array<i64: 4, 8, 8>}, {pipeline_mode = #tpu.pipeline_mode<synchronous>, transform_indices = @transform_3, window_bounds = array<i64: 4, 8, 8>}, {transform_indices = @transform_4, window_bounds = array<i64: 4, 128>}, {transform_indices = @transform_5, window_bounds = array<i64: 4, 8, 128>}]} {
    %c0 = arith.constant 0 : index
    %c0_0 = arith.constant 0 : index
    %0 = vector.load %arg1[%c0, %c0_0] : memref<1x128xi32, #tpu.memory_space<vmem>>, vector<1x128xi32>
    %1 = tpu.iota {dimensions = array<i32: 0>} : vector<8x128xi32>
    %2 = vector.broadcast %0 : vector<1x128xi32> to vector<8x128xi32>
    %3 = arith.cmpi eq, %1, %2 : vector<8x128xi32>
    %4 = arith.extui %3 : vector<8x128xi1> to vector<8x128xi32>
    %5 = arith.sitofp %4 : vector<8x128xi32> to vector<8x128xf32>
    %c0_1 = arith.constant 0 : index
    %c0_2 = arith.constant 0 : index
    %c0_3 = arith.constant 0 : index
    %6 = vector.load %arg4[%c0_1, %c0_2, %c0_3] : memref<4x8x8xf32, #tpu.memory_space<vmem>>, vector<1x8x8xf32>
    %7 = vector.shape_cast %6 : vector<1x8x8xf32> to vector<8x8xf32>
    %cst = arith.constant dense<0.000000e+00> : vector<8x128xf32>
    %8 = tpu.matmul %7, %5, %cst {dimension_numbers = #tpu.dot_dimension_numbers<[1], [0], [0], [1], [0, 0, 1, 1], [], []>} : vector<8x8xf32>, vector<8x128xf32>, vector<8x128xf32> -> vector<8x128xf32>
    %c0_4 = arith.constant 0 : index
    %c0_5 = arith.constant 0 : index
    %c0_6 = arith.constant 0 : index
    %9 = vector.load %arg3[%c0_4, %c0_5, %c0_6] : memref<4x8x8xf32, #tpu.memory_space<vmem>>, vector<1x8x8xf32>
    %10 = vector.shape_cast %9 : vector<1x8x8xf32> to vector<8x8xf32>
    %c0_7 = arith.constant 0 : index
    %c0_8 = arith.constant 0 : index
    %c0_9 = arith.constant 0 : index
    %11 = vector.load %arg2[%c0_7, %c0_8, %c0_9] : memref<4x8x128xf32, #tpu.memory_space<vmem>>, vector<1x8x128xf32>
    %12 = vector.shape_cast %11 : vector<1x8x128xf32> to vector<8x128xf32>
    %cst_10 = arith.constant dense<0.000000e+00> : vector<8x128xf32>
    %13 = tpu.matmul %10, %12, %cst_10 {dimension_numbers = #tpu.dot_dimension_numbers<[1], [0], [0], [1], [0, 0, 1, 1], [], []>} : vector<8x8xf32>, vector<8x128xf32>, vector<8x128xf32> -> vector<8x128xf32>
    %14 = arith.mulf %8, %13 : vector<8x128xf32>
    %cst_11 = arith.constant dense<0.000000e+00> : vector<128xf32>
    %15 = vector.multi_reduction <add>, %14, %cst_11 [0] : vector<8x128xf32> to vector<128xf32>
    %16 = vector.shape_cast %15 : vector<128xf32> to vector<1x128xf32>
    %cst_12 = arith.constant 6.400000e-11 : f32
    %17 = vector.broadcast %cst_12 : f32 to vector<1x128xf32>
    %18 = arith.addf %16, %17 : vector<1x128xf32>
    %cst_13 = arith.constant 1.000000e+00 : f32
    %19 = vector.broadcast %cst_13 : f32 to vector<1x128xf32>
    %20 = arith.divf %19, %18 : vector<1x128xf32>
    %cst_14 = arith.constant 8.000000e-12 : f32
    %21 = vector.broadcast %cst_14 : f32 to vector<8x128xf32>
    %22 = arith.addf %14, %21 : vector<8x128xf32>
    %23 = vector.broadcast %20 : vector<1x128xf32> to vector<8x128xf32>
    %24 = arith.mulf %22, %23 : vector<8x128xf32>
    %c0_15 = arith.constant 0 : index
    %c0_16 = arith.constant 0 : index
    %c0_17 = arith.constant 0 : index
    %25 = vector.load %arg6[%c0_15, %c0_16, %c0_17] : memref<4x8x128xf32, #tpu.memory_space<vmem>>, vector<1x8x128xf32>
    %26 = vector.shape_cast %25 : vector<1x8x128xf32> to vector<8x128xf32>
    %27 = vector.shape_cast %24 : vector<8x128xf32> to vector<1x8x128xf32>
    tpu.vector_store %arg6[%c0_15, %c0_16, %c0_17], %27 {strides = array<i32>} : memref<4x8x128xf32, #tpu.memory_space<vmem>>, vector<1x8x128xf32>,
    %28 = math.log %18 : vector<1x128xf32>
    %c1 = arith.constant 1 : index
    %c0_18 = arith.constant 0 : index
    %c0_19 = arith.constant 0 : index
    %29 = vector.load %arg4[%c1, %c0_18, %c0_19] : memref<4x8x8xf32, #tpu.memory_space<vmem>>, vector<1x8x8xf32>
    %30 = vector.shape_cast %29 : vector<1x8x8xf32> to vector<8x8xf32>
    %cst_20 = arith.constant dense<0.000000e+00> : vector<8x128xf32>
    %31 = tpu.matmul %30, %5, %cst_20 {dimension_numbers = #tpu.dot_dimension_numbers<[1], [0], [0], [1], [0, 0, 1, 1], [], []>} : vector<8x8xf32>, vector<8x128xf32>, vector<8x128xf32> -> vector<8x128xf32>
    %c1_21 = arith.constant 1 : index
    %c0_22 = arith.constant 0 : index
    %c0_23 = arith.constant 0 : index
    %32 = vector.load %arg3[%c1_21, %c0_22, %c0_23] : memref<4x8x8xf32, #tpu.memory_space<vmem>>, vector<1x8x8xf32>
    %33 = vector.shape_cast %32 : vector<1x8x8xf32> to vector<8x8xf32>
    %c1_24 = arith.constant 1 : index
    %c0_25 = arith.constant 0 : index
    %c0_26 = arith.constant 0 : index
    %34 = vector.load %arg2[%c1_24, %c0_25, %c0_26] : memref<4x8x128xf32, #tpu.memory_space<vmem>>, vector<1x8x128xf32>
    %35 = vector.shape_cast %34 : vector<1x8x128xf32> to vector<8x128xf32>
    %cst_27 = arith.constant dense<0.000000e+00> : vector<8x128xf32>
    %36 = tpu.matmul %33, %35, %cst_27 {dimension_numbers = #tpu.dot_dimension_numbers<[1], [0], [0], [1], [0, 0, 1, 1], [], []>} : vector<8x8xf32>, vector<8x128xf32>, vector<8x128xf32> -> vector<8x128xf32>
    %37 = arith.mulf %31, %36 : vector<8x128xf32>
    %cst_28 = arith.constant dense<0.000000e+00> : vector<128xf32>
    %38 = vector.multi_reduction <add>, %37, %cst_28 [0] : vector<8x128xf32> to vector<128xf32>
    %39 = vector.shape_cast %38 : vector<128xf32> to vector<1x128xf32>
    %cst_29 = arith.constant 6.400000e-11 : f32
    %40 = vector.broadcast %cst_29 : f32 to vector<1x128xf32>
    %41 = arith.addf %39, %40 : vector<1x128xf32>
    %cst_30 = arith.constant 1.000000e+00 : f32
    %42 = vector.broadcast %cst_30 : f32 to vector<1x128xf32>
    %43 = arith.divf %42, %41 : vector<1x128xf32>
    %cst_31 = arith.constant 8.000000e-12 : f32
    %44 = vector.broadcast %cst_31 : f32 to vector<8x128xf32>
    %45 = arith.addf %37, %44 : vector<8x128xf32>
    %46 = vector.broadcast %43 : vector<1x128xf32> to vector<8x128xf32>
    %47 = arith.mulf %45, %46 : vector<8x128xf32>
    %c1_32 = arith.constant 1 : index
    %c0_33 = arith.constant 0 : index
    %c0_34 = arith.constant 0 : index
    %48 = vector.load %arg6[%c1_32, %c0_33, %c0_34] : memref<4x8x128xf32, #tpu.memory_space<vmem>>, vector<1x8x128xf32>
    %49 = vector.shape_cast %48 : vector<1x8x128xf32> to vector<8x128xf32>
    %50 = vector.shape_cast %47 : vector<8x128xf32> to vector<1x8x128xf32>
    tpu.vector_store %arg6[%c1_32, %c0_33, %c0_34], %50 {strides = array<i32>} : memref<4x8x128xf32, #tpu.memory_space<vmem>>, vector<1x8x128xf32>,
    %51 = math.log %41 : vector<1x128xf32>
    %c2 = arith.constant 2 : index
    %c0_35 = arith.constant 0 : index
    %c0_36 = arith.constant 0 : index
    %52 = vector.load %arg4[%c2, %c0_35, %c0_36] : memref<4x8x8xf32, #tpu.memory_space<vmem>>, vector<1x8x8xf32>
    %53 = vector.shape_cast %52 : vector<1x8x8xf32> to vector<8x8xf32>
    %cst_37 = arith.constant dense<0.000000e+00> : vector<8x128xf32>
    %54 = tpu.matmul %53, %5, %cst_37 {dimension_numbers = #tpu.dot_dimension_numbers<[1], [0], [0], [1], [0, 0, 1, 1], [], []>} : vector<8x8xf32>, vector<8x128xf32>, vector<8x128xf32> -> vector<8x128xf32>
    %c2_38 = arith.constant 2 : index
    %c0_39 = arith.constant 0 : index
    %c0_40 = arith.constant 0 : index
    %55 = vector.load %arg3[%c2_38, %c0_39, %c0_40] : memref<4x8x8xf32, #tpu.memory_space<vmem>>, vector<1x8x8xf32>
    %56 = vector.shape_cast %55 : vector<1x8x8xf32> to vector<8x8xf32>
    %c2_41 = arith.constant 2 : index
    %c0_42 = arith.constant 0 : index
    %c0_43 = arith.constant 0 : index
    %57 = vector.load %arg2[%c2_41, %c0_42, %c0_43] : memref<4x8x128xf32, #tpu.memory_space<vmem>>, vector<1x8x128xf32>
    %58 = vector.shape_cast %57 : vector<1x8x128xf32> to vector<8x128xf32>
    %cst_44 = arith.constant dense<0.000000e+00> : vector<8x128xf32>
    %59 = tpu.matmul %56, %58, %cst_44 {dimension_numbers = #tpu.dot_dimension_numbers<[1], [0], [0], [1], [0, 0, 1, 1], [], []>} : vector<8x8xf32>, vector<8x128xf32>, vector<8x128xf32> -> vector<8x128xf32>
    %60 = arith.mulf %54, %59 : vector<8x128xf32>
    %cst_45 = arith.constant dense<0.000000e+00> : vector<128xf32>
    %61 = vector.multi_reduction <add>, %60, %cst_45 [0] : vector<8x128xf32> to vector<128xf32>
    %62 = vector.shape_cast %61 : vector<128xf32> to vector<1x128xf32>
    %cst_46 = arith.constant 6.400000e-11 : f32
    %63 = vector.broadcast %cst_46 : f32 to vector<1x128xf32>
    %64 = arith.addf %62, %63 : vector<1x128xf32>
    %cst_47 = arith.constant 1.000000e+00 : f32
    %65 = vector.broadcast %cst_47 : f32 to vector<1x128xf32>
    %66 = arith.divf %65, %64 : vector<1x128xf32>
    %cst_48 = arith.constant 8.000000e-12 : f32
    %67 = vector.broadcast %cst_48 : f32 to vector<8x128xf32>
    %68 = arith.addf %60, %67 : vector<8x128xf32>
    %69 = vector.broadcast %66 : vector<1x128xf32> to vector<8x128xf32>
    %70 = arith.mulf %68, %69 : vector<8x128xf32>
    %c2_49 = arith.constant 2 : index
    %c0_50 = arith.constant 0 : index
    %c0_51 = arith.constant 0 : index
    %71 = vector.load %arg6[%c2_49, %c0_50, %c0_51] : memref<4x8x128xf32, #tpu.memory_space<vmem>>, vector<1x8x128xf32>
    %72 = vector.shape_cast %71 : vector<1x8x128xf32> to vector<8x128xf32>
    %73 = vector.shape_cast %70 : vector<8x128xf32> to vector<1x8x128xf32>
    tpu.vector_store %arg6[%c2_49, %c0_50, %c0_51], %73 {strides = array<i32>} : memref<4x8x128xf32, #tpu.memory_space<vmem>>, vector<1x8x128xf32>,
    %74 = math.log %64 : vector<1x128xf32>
    %c3 = arith.constant 3 : index
    %c0_52 = arith.constant 0 : index
    %c0_53 = arith.constant 0 : index
    %75 = vector.load %arg4[%c3, %c0_52, %c0_53] : memref<4x8x8xf32, #tpu.memory_space<vmem>>, vector<1x8x8xf32>
    %76 = vector.shape_cast %75 : vector<1x8x8xf32> to vector<8x8xf32>
    %cst_54 = arith.constant dense<0.000000e+00> : vector<8x128xf32>
    %77 = tpu.matmul %76, %5, %cst_54 {dimension_numbers = #tpu.dot_dimension_numbers<[1], [0], [0], [1], [0, 0, 1, 1], [], []>} : vector<8x8xf32>, vector<8x128xf32>, vector<8x128xf32> -> vector<8x128xf32>
    %c3_55 = arith.constant 3 : index
    %c0_56 = arith.constant 0 : index
    %c0_57 = arith.constant 0 : index
    %78 = vector.load %arg3[%c3_55, %c0_56, %c0_57] : memref<4x8x8xf32, #tpu.memory_space<vmem>>, vector<1x8x8xf32>
    %79 = vector.shape_cast %78 : vector<1x8x8xf32> to vector<8x8xf32>
    %c3_58 = arith.constant 3 : index
    %c0_59 = arith.constant 0 : index
    %c0_60 = arith.constant 0 : index
    %80 = vector.load %arg2[%c3_58, %c0_59, %c0_60] : memref<4x8x128xf32, #tpu.memory_space<vmem>>, vector<1x8x128xf32>
    %81 = vector.shape_cast %80 : vector<1x8x128xf32> to vector<8x128xf32>
    %cst_61 = arith.constant dense<0.000000e+00> : vector<8x128xf32>
    %82 = tpu.matmul %79, %81, %cst_61 {dimension_numbers = #tpu.dot_dimension_numbers<[1], [0], [0], [1], [0, 0, 1, 1], [], []>} : vector<8x8xf32>, vector<8x128xf32>, vector<8x128xf32> -> vector<8x128xf32>
    %83 = arith.mulf %77, %82 : vector<8x128xf32>
    %cst_62 = arith.constant dense<0.000000e+00> : vector<128xf32>
    %84 = vector.multi_reduction <add>, %83, %cst_62 [0] : vector<8x128xf32> to vector<128xf32>
    %85 = vector.shape_cast %84 : vector<128xf32> to vector<1x128xf32>
    %cst_63 = arith.constant 6.400000e-11 : f32
    %86 = vector.broadcast %cst_63 : f32 to vector<1x128xf32>
    %87 = arith.addf %85, %86 : vector<1x128xf32>
    %cst_64 = arith.constant 1.000000e+00 : f32
    %88 = vector.broadcast %cst_64 : f32 to vector<1x128xf32>
    %89 = arith.divf %88, %87 : vector<1x128xf32>
    %cst_65 = arith.constant 8.000000e-12 : f32
    %90 = vector.broadcast %cst_65 : f32 to vector<8x128xf32>
    %91 = arith.addf %83, %90 : vector<8x128xf32>
    %92 = vector.broadcast %89 : vector<1x128xf32> to vector<8x128xf32>
    %93 = arith.mulf %91, %92 : vector<8x128xf32>
    %c3_66 = arith.constant 3 : index
    %c0_67 = arith.constant 0 : index
    %c0_68 = arith.constant 0 : index
    %94 = vector.load %arg6[%c3_66, %c0_67, %c0_68] : memref<4x8x128xf32, #tpu.memory_space<vmem>>, vector<1x8x128xf32>
    %95 = vector.shape_cast %94 : vector<1x8x128xf32> to vector<8x128xf32>
    %96 = vector.shape_cast %93 : vector<8x128xf32> to vector<1x8x128xf32>
    tpu.vector_store %arg6[%c3_66, %c0_67, %c0_68], %96 {strides = array<i32>} : memref<4x8x128xf32, #tpu.memory_space<vmem>>, vector<1x8x128xf32>,
    %97 = math.log %87 : vector<1x128xf32>
    %98 = tpu.concatenate %28, %51, %74, %97 in 0 : vector<1x128xf32>, vector<1x128xf32>, vector<1x128xf32>, vector<1x128xf32> -> vector<4x128xf32>
    %c0_69 = arith.constant 0 : index
    %c0_70 = arith.constant 0 : index
    %99 = vector.load %arg5[%c0_69, %c0_70] : memref<4x128xf32, #tpu.memory_space<vmem>>, vector<4x128xf32>
    tpu.vector_store %arg5[%c0_69, %c0_70], %98 {strides = array<i32>} : memref<4x128xf32, #tpu.memory_space<vmem>>, vector<4x128xf32>,
    return
  }
  func.func @transform_0(%arg0: i32) -> (i32, i32) {
    %c0_i32 = arith.constant 0 : i32
    %c0_i32_0 = arith.constant 0 : i32
    return %c0_i32, %arg0 : i32, i32
  }
  func.func @transform_1(%arg0: i32) -> (i32, i32, i32) {
    %c0_i32 = arith.constant 0 : i32
    %c0_i32_0 = arith.constant 0 : i32
    %c0_i32_1 = arith.constant 0 : i32
    return %c0_i32, %c0_i32_0, %arg0 : i32, i32, i32
  }
  func.func @transform_2(%arg0: i32) -> (i32, i32, i32) {
    %c0_i32 = arith.constant 0 : i32
    %c0_i32_0 = arith.constant 0 : i32
    %c0_i32_1 = arith.constant 0 : i32
    %c0_i32_2 = arith.constant 0 : i32
    return %c0_i32, %c0_i32_0, %c0_i32_1 : i32, i32, i32
  }
  func.func @transform_3(%arg0: i32) -> (i32, i32, i32) {
    %c0_i32 = arith.constant 0 : i32
    %c0_i32_0 = arith.constant 0 : i32
    %c0_i32_1 = arith.constant 0 : i32
    %c0_i32_2 = arith.constant 0 : i32
    return %c0_i32, %c0_i32_0, %c0_i32_1 : i32, i32, i32
  }
  func.func @transform_4(%arg0: i32) -> (i32, i32) {
    %c0_i32 = arith.constant 0 : i32
    %c0_i32_0 = arith.constant 0 : i32
    return %c0_i32, %arg0 : i32, i32
  }
  func.func @transform_5(%arg0: i32) -> (i32, i32, i32) {
    %c0_i32 = arith.constant 0 : i32
    %c0_i32_0 = arith.constant 0 : i32
    %c0_i32_1 = arith.constant 0 : i32
    return %c0_i32, %c0_i32_0, %arg0 : i32, i32, i32
  }
}

</mosaic_0001>

<llo_original>
// kernel: cgmm_layer_forward.1
$region0: #{cgmm_layer_forward.1}
  #allocation0 [shape = 'u32[]', space=smem, size = 0x4, offset = 0x4, fixed_abs, tag = 'smem constant byte address 0x4 - core index']
  #allocation1 [shape = 'u32[144,128]{1,0:T(1,128)}', space=vmem, size = 0x12000, scoped, tag = 'internal scratch']
  %s0 = inlined_call_operand.vmem [shape: s32[1,128], index: 0, kind: input, shape index: {}]
  %s1 = inlined_call_operand.vmem [shape: f32[4,8,128], index: 1, kind: input, shape index: {}]
  %s2 = inlined_call_operand.vmem [shape: f32[4,8,8], index: 2, kind: input, shape index: {}]
  %s3 = inlined_call_operand.vmem [shape: f32[4,8,8], index: 3, kind: input, shape index: {}]
  %s4 = inlined_call_operand.vmem [shape: f32[4,128], index: 4, kind: output, shape index: {0}]
  %s5 = inlined_call_operand.vmem [shape: f32[4,8,128], index: 5, kind: output, shape index: {1}]
  %6 = xla_tuple %s4, %s5
  %s7 = sld [smem:[#allocation0]]
  $region34: #{cgmm_layer_forward.1} parent=0
    _
  %s9 = ssub.s32 1, %s7
  %s10 = scalar_select 0, %s9, %s7
  // Predicated region
  $region2: #{cgmm_layer_forward.1} parent=0 // pred_check
    _
  $region3: #{cgmm_layer_forward.1} parent=0 // pred_check_branch
    %12 = sbr.rel (0) target = $region5
  $region4: #{cgmm_layer_forward.1} parent=0 // pred_region
    _
  $region5: #{cgmm_layer_forward.1} parent=0 // pred_fallthru
    _
  // Predicated region
  $region6: #{cgmm_layer_forward.1} parent=0 // pred_check
    _
  $region7: #{cgmm_layer_forward.1} parent=0 // pred_check_branch
    %14 = sbr.rel (0) target = $region9
  $region8: #{cgmm_layer_forward.1} parent=0 // pred_region
    _
  $region9: #{cgmm_layer_forward.1} parent=0 // pred_fallthru
    _
  // Predicated region
  $region10: #{cgmm_layer_forward.1} parent=0 // pred_check
    _
  $region11: #{cgmm_layer_forward.1} parent=0 // pred_check_branch
    %16 = sbr.rel (0) target = $region13
  $region12: #{cgmm_layer_forward.1} parent=0 // pred_region
    _
  $region13: #{cgmm_layer_forward.1} parent=0 // pred_fallthru
    _
  // Predicated region
  $region14: #{cgmm_layer_forward.1} parent=0 // pred_check
    _
  $region15: #{cgmm_layer_forward.1} parent=0 // pred_check_branch
    %18 = sbr.rel (0) target = $region17
  $region16: #{cgmm_layer_forward.1} parent=0 // pred_region
    _
  $region17: #{cgmm_layer_forward.1} parent=0 // pred_fallthru
    _
  %v19 = vld [vmem:[%s0] sm:$0x1]
  %v20 = vlaneseq
  %v21 = vshrl.u32 %v20, 7
  %v22 = vlaneseq
  %v23 = vshrl.u32 %v22, 7
  %v24 = vsub.s32 0, %v23
  %v25 = vrot.slane %v19, %v24
  %vm26 = vcmp.eq.s32.totalorder %v21, %v25
  %v27 = vsel %vm26, 1, 0
  %v28 = vcvt.s32.f32 %v27
  %v29 = vld [vmem:[%s3] sm:$0xff]
  %vm30 = vcmask 64512
  %v32 = vsel %vm30, %v29, 0
  %34 = vmatprep.subr.mxu0 0.0
  %35 = vmatpush1.msra.mxu0 %v28
  %36 = vmatprep.subr.mxu0 0.0
  %37 = vmatpush1.msra.mxu0 0.0
  %38 = vmatprep.subr.mxu0 0.0
  %39 = vmatpush1.msra.mxu0 0.0
  %40 = vmatprep.subr.mxu0 0.0
  %41 = vmatpush1.msra.mxu0 0.0
  %42 = vmatprep.subr.mxu0 0.0
  %43 = vmatpush1.msra.mxu0 0.0
  %44 = vmatprep.subr.mxu0 0.0
  %45 = vmatpush1.msra.mxu0 0.0
  %46 = vmatprep.subr.mxu0 0.0
  %47 = vmatpush1.msra.mxu0 0.0
  %48 = vmatprep.subr.mxu0 0.0
  %49 = vmatpush1.msra.mxu0 0.0
  %50 = vmatprep.subr.mxu0 0.0
  %51 = vmatpush1.msra.mxu0 0.0
  %52 = vmatprep.subr.mxu0 0.0
  %53 = vmatpush1.msra.mxu0 0.0
  %54 = vmatprep.subr.mxu0 0.0
  %55 = vmatpush1.msra.mxu0 0.0
  %56 = vmatprep.subr.mxu0 0.0
  %57 = vmatpush1.msra.mxu0 0.0
  %58 = vmatprep.subr.mxu0 0.0
  %59 = vmatpush1.msra.mxu0 0.0
  %60 = vmatprep.subr.mxu0 0.0
  %61 = vmatpush1.msra.mxu0 0.0
  %62 = vmatprep.subr.mxu0 0.0
  %63 = vmatpush1.msra.mxu0 0.0
  %64 = vmatprep.subr.mxu0 0.0
  %65 = vmatpush1.msra.mxu0 0.0
  %66 = vmatprep.subr.mxu0 0.0
  %67 = vmatpush1.msra.mxu0 0.0
  %68 = vmatprep.subr.mxu0 0.0
  %69 = vmatpush1.msra.mxu0 0.0
  %70 = vmatprep.subr.mxu0 0.0
  %71 = vmatpush1.msra.mxu0 0.0
  %72 = vmatprep.subr.mxu0 0.0
  %73 = vmatpush1.msra.mxu0 0.0
  %74 = vmatprep.subr.mxu0 0.0
  %75 = vmatpush1.msra.mxu0 0.0
  %76 = vmatprep.subr.mxu0 0.0
  %77 = vmatpush1.msra.mxu0 0.0
  %78 = vmatprep.subr.mxu0 0.0
  %79 = vmatpush1.msra.mxu0 0.0
  %80 = vmatprep.subr.mxu0 0.0
  %81 = vmatpush1.msra.mxu0 0.0
  %82 = vmatprep.subr.mxu0 0.0
  %83 = vmatpush1.msra.mxu0 0.0
  %84 = vmatprep.subr.mxu0 0.0
  %85 = vmatpush1.msra.mxu0 0.0
  %86 = vmatprep.subr.mxu0 0.0
  %87 = vmatpush1.msra.mxu0 0.0
  %88 = vmatprep.subr.mxu0 0.0
  %89 = vmatpush1.msra.mxu0 0.0
  %90 = vmatprep.subr.mxu0 0.0
  %91 = vmatpush1.msra.mxu0 0.0
  %92 = vmatprep.subr.mxu0 0.0
  %93 = vmatpush1.msra.mxu0 0.0
  %94 = vmatprep.subr.mxu0 0.0
  %95 = vmatpush1.msra.mxu0 0.0
  %96 = vmatprep.subr.mxu0 0.0
  %97 = vmatpush1.msra.mxu0 0.0
  %98 = vmatprep.mubr.f32.mxu0 0.0
  %99 = vmatmul.mubr.f32.gmra.mrb[0].mxu0 %v32
  %v100 = vpop.f32.mrb[0].mxu0
  %v101 = vadd.f32 0.0, %v100
  %v102 = vpop.f32.mrb[0].mxu0
  %103 = vdwg.mxu0
  %v104 = vld [vmem:[%s2] sm:$0xff]
  %v105 = vld [vmem:[%s1] sm:$0xff]
  %v107 = vsel %vm30, %v104, 0
  %109 = vmatprep.subr.mxu0 0.0
  %110 = vmatpush1.msra.mxu0 %v105
  %111 = vmatprep.subr.mxu0 0.0
  %112 = vmatpush1.msra.mxu0 0.0
  %113 = vmatprep.subr.mxu0 0.0
  %114 = vmatpush1.msra.mxu0 0.0
  %115 = vmatprep.subr.mxu0 0.0
  %116 = vmatpush1.msra.mxu0 0.0
  %117 = vmatprep.subr.mxu0 0.0
  %118 = vmatpush1.msra.mxu0 0.0
  %119 = vmatprep.subr.mxu0 0.0
  %120 = vmatpush1.msra.mxu0 0.0
  %121 = vmatprep.subr.mxu0 0.0
  %122 = vmatpush1.msra.mxu0 0.0
  %123 = vmatprep.subr.mxu0 0.0
  %124 = vmatpush1.msra.mxu0 0.0
  %125 = vmatprep.subr.mxu0 0.0
  %126 = vmatpush1.msra.mxu0 0.0
  %127 = vmatprep.subr.mxu0 0.0
  %128 = vmatpush1.msra.mxu0 0.0
  %129 = vmatprep.subr.mxu0 0.0
  %130 = vmatpush1.msra.mxu0 0.0
  %131 = vmatprep.subr.mxu0 0.0
  %132 = vmatpush1.msra.mxu0 0.0
  %133 = vmatprep.subr.mxu0 0.0
  %134 = vmatpush1.msra.mxu0 0.0
  %135 = vmatprep.subr.mxu0 0.0
  %136 = vmatpush1.msra.mxu0 0.0
  %137 = vmatprep.subr.mxu0 0.0
  %138 = vmatpush1.msra.mxu0 0.0
  %139 = vmatprep.subr.mxu0 0.0
  %140 = vmatpush1.msra.mxu0 0.0
  %141 = vmatprep.subr.mxu0 0.0
  %142 = vmatpush1.msra.mxu0 0.0
  %143 = vmatprep.subr.mxu0 0.0
  %144 = vmatpush1.msra.mxu0 0.0
  %145 = vmatprep.subr.mxu0 0.0
  %146 = vmatpush1.msra.mxu0 0.0
  %147 = vmatprep.subr.mxu0 0.0
  %148 = vmatpush1.msra.mxu0 0.0
  %149 = vmatprep.subr.mxu0 0.0
  %150 = vmatpush1.msra.mxu0 0.0
  %151 = vmatprep.subr.mxu0 0.0
  %152 = vmatpush1.msra.mxu0 0.0
  %153 = vmatprep.subr.mxu0 0.0
  %154 = vmatpush1.msra.mxu0 0.0
  %155 = vmatprep.subr.mxu0 0.0
  %156 = vmatpush1.msra.mxu0 0.0
  %157 = vmatprep.subr.mxu0 0.0
  %158 = vmatpush1.msra.mxu0 0.0
  %159 = vmatprep.subr.mxu0 0.0
  %160 = vmatpush1.msra.mxu0 0.0
  %161 = vmatprep.subr.mxu0 0.0
  %162 = vmatpush1.msra.mxu0 0.0
  %163 = vmatprep.subr.mxu0 0.0
  %164 = vmatpush1.msra.mxu0 0.0
  %165 = vmatprep.subr.mxu0 0.0
  %166 = vmatpush1.msra.mxu0 0.0
  %167 = vmatprep.subr.mxu0 0.0
  %168 = vmatpush1.msra.mxu0 0.0
  %169 = vmatprep.subr.mxu0 0.0
  %170 = vmatpush1.msra.mxu0 0.0
  %171 = vmatprep.subr.mxu0 0.0
  %172 = vmatpush1.msra.mxu0 0.0
  %173 = vmatprep.mubr.f32.mxu0 0.0
  %174 = vmatmul.mubr.f32.gmra.mrb[0].mxu0 %v107
  %v175 = vpop.f32.mrb[0].mxu0
  %v176 = vadd.f32 0.0, %v175
  %v177 = vpop.f32.mrb[0].mxu0
  %178 = vdwg.mxu0
  %v179 = vmul.f32 %v101, %v176
  %v180 = vrot.slane %v179, 4
  %v181 = vadd.f32 %v179, %v180
  %v182 = vrot.slane %v181, 2
  %v183 = vadd.f32 %v181, %v182
  %v184 = vrot.slane %v183, 1
  %v185 = vadd.f32 %v183, %v184
  %v186 = vadd.f32 %v185, 6.4e-11
  %v187 = vrcp.pop %v186
  %v188 = vmul.f32 1.0, %v187
  %v189 = vadd.f32 %v179, 8e-12
  %v190 = vmul.f32 %v189, %v188
  %191 = vst [vmem:[%s5] sm:$0xff] %v190
  %v192 = vlog2.pop %v186
  %v193 = vmul.f32 %v192, 0.6931472
  %s194 = scalar_lea.vmem %s3, 8
  %v195 = vld [vmem:[%s194] sm:$0xff]
  %v197 = vsel %vm30, %v195, 0
  %199 = vmatprep.subr.mxu0 0.0
  %200 = vmatpush1.msra.mxu0 %v28
  %201 = vmatprep.subr.mxu0 0.0
  %202 = vmatpush1.msra.mxu0 0.0
  %203 = vmatprep.subr.mxu0 0.0
  %204 = vmatpush1.msra.mxu0 0.0
  %205 = vmatprep.subr.mxu0 0.0
  %206 = vmatpush1.msra.mxu0 0.0
  %207 = vmatprep.subr.mxu0 0.0
  %208 = vmatpush1.msra.mxu0 0.0
  %209 = vmatprep.subr.mxu0 0.0
  %210 = vmatpush1.msra.mxu0 0.0
  %211 = vmatprep.subr.mxu0 0.0
  %212 = vmatpush1.msra.mxu0 0.0
  %213 = vmatprep.subr.mxu0 0.0
  %214 = vmatpush1.msra.mxu0 0.0
  %215 = vmatprep.subr.mxu0 0.0
  %216 = vmatpush1.msra.mxu0 0.0
  %217 = vmatprep.subr.mxu0 0.0
  %218 = vmatpush1.msra.mxu0 0.0
  %219 = vmatprep.subr.mxu0 0.0
  %220 = vmatpush1.msra.mxu0 0.0
  %221 = vmatprep.subr.mxu0 0.0
  %222 = vmatpush1.msra.mxu0 0.0
  %223 = vmatprep.subr.mxu0 0.0
  %224 = vmatpush1.msra.mxu0 0.0
  %225 = vmatprep.subr.mxu0 0.0
  %226 = vmatpush1.msra.mxu0 0.0
  %227 = vmatprep.subr.mxu0 0.0
  %228 = vmatpush1.msra.mxu0 0.0
  %229 = vmatprep.subr.mxu0 0.0
  %230 = vmatpush1.msra.mxu0 0.0
  %231 = vmatprep.subr.mxu0 0.0
  %232 = vmatpush1.msra.mxu0 0.0
  %233 = vmatprep.subr.mxu0 0.0
  %234 = vmatpush1.msra.mxu0 0.0
  %235 = vmatprep.subr.mxu0 0.0
  %236 = vmatpush1.msra.mxu0 0.0
  %237 = vmatprep.subr.mxu0 0.0
  %238 = vmatpush1.msra.mxu0 0.0
  %239 = vmatprep.subr.mxu0 0.0
  %240 = vmatpush1.msra.mxu0 0.0
  %241 = vmatprep.subr.mxu0 0.0
  %242 = vmatpush1.msra.mxu0 0.0
  %243 = vmatprep.subr.mxu0 0.0
  %244 = vmatpush1.msra.mxu0 0.0
  %245 = vmatprep.subr.mxu0 0.0
  %246 = vmatpush1.msra.mxu0 0.0
  %247 = vmatprep.subr.mxu0 0.0
  %248 = vmatpush1.msra.mxu0 0.0
  %249 = vmatprep.subr.mxu0 0.0
  %250 = vmatpush1.msra.mxu0 0.0
  %251 = vmatprep.subr.mxu0 0.0
  %252 = vmatpush1.msra.mxu0 0.0
  %253 = vmatprep.subr.mxu0 0.0
  %254 = vmatpush1.msra.mxu0 0.0
  %255 = vmatprep.subr.mxu0 0.0
  %256 = vmatpush1.msra.mxu0 0.0
  %257 = vmatprep.subr.mxu0 0.0
  %258 = vmatpush1.msra.mxu0 0.0
  %259 = vmatprep.subr.mxu0 0.0
  %260 = vmatpush1.msra.mxu0 0.0
  %261 = vmatprep.subr.mxu0 0.0
  %262 = vmatpush1.msra.mxu0 0.0
  %263 = vmatprep.mubr.f32.mxu0 0.0
  %264 = vmatmul.mubr.f32.gmra.mrb[0].mxu0 %v197
  %v265 = vpop.f32.mrb[0].mxu0
  %v266 = vadd.f32 0.0, %v265
  %v267 = vpop.f32.mrb[0].mxu0
  %268 = vdwg.mxu0
  %s269 = scalar_lea.vmem %s2, 8
  %v270 = vld [vmem:[%s269] sm:$0xff]
  %s271 = scalar_lea.vmem %s1, 8
  %v272 = vld [vmem:[%s271] sm:$0xff]
  %v274 = vsel %vm30, %v270, 0
  %276 = vmatprep.subr.mxu0 0.0
  %277 = vmatpush1.msra.mxu0 %v272
  %278 = vmatprep.subr.mxu0 0.0
  %279 = vmatpush1.msra.mxu0 0.0
  %280 = vmatprep.subr.mxu0 0.0
  %281 = vmatpush1.msra.mxu0 0.0
  %282 = vmatprep.subr.mxu0 0.0
  %283 = vmatpush1.msra.mxu0 0.0
  %284 = vmatprep.subr.mxu0 0.0
  %285 = vmatpush1.msra.mxu0 0.0
  %286 = vmatprep.subr.mxu0 0.0
  %287 = vmatpush1.msra.mxu0 0.0
  %288 = vmatprep.subr.mxu0 0.0
  %289 = vmatpush1.msra.mxu0 0.0
  %290 = vmatprep.subr.mxu0 0.0
  %291 = vmatpush1.msra.mxu0 0.0
  %292 = vmatprep.subr.mxu0 0.0
  %293 = vmatpush1.msra.mxu0 0.0
  %294 = vmatprep.subr.mxu0 0.0
  %295 = vmatpush1.msra.mxu0 0.0
  %296 = vmatprep.subr.mxu0 0.0
  %297 = vmatpush1.msra.mxu0 0.0
  %298 = vmatprep.subr.mxu0 0.0
  %299 = vmatpush1.msra.mxu0 0.0
  %300 = vmatprep.subr.mxu0 0.0
  %301 = vmatpush1.msra.mxu0 0.0
  %302 = vmatprep.subr.mxu0 0.0
  %303 = vmatpush1.msra.mxu0 0.0
  %304 = vmatprep.subr.mxu0 0.0
  %305 = vmatpush1.msra.mxu0 0.0
  %306 = vmatprep.subr.mxu0 0.0
  %307 = vmatpush1.msra.mxu0 0.0
  %308 = vmatprep.subr.mxu0 0.0
  %309 = vmatpush1.msra.mxu0 0.0
  %310 = vmatprep.subr.mxu0 0.0
  %311 = vmatpush1.msra.mxu0 0.0
  %312 = vmatprep.subr.mxu0 0.0
  %313 = vmatpush1.msra.mxu0 0.0
  %314 = vmatprep.subr.mxu0 0.0
  %315 = vmatpush1.msra.mxu0 0.0
  %316 = vmatprep.subr.mxu0 0.0
  %317 = vmatpush1.msra.mxu0 0.0
  %318 = vmatprep.subr.mxu0 0.0
  %319 = vmatpush1.msra.mxu0 0.0
  %320 = vmatprep.subr.mxu0 0.0
  %321 = vmatpush1.msra.mxu0 0.0
  %322 = vmatprep.subr.mxu0 0.0
  %323 = vmatpush1.msra.mxu0 0.0
  %324 = vmatprep.subr.mxu0 0.0
  %325 = vmatpush1.msra.mxu0 0.0
  %326 = vmatprep.subr.mxu0 0.0
  %327 = vmatpush1.msra.mxu0 0.0
  %328 = vmatprep.subr.mxu0 0.0
  %329 = vmatpush1.msra.mxu0 0.0
  %330 = vmatprep.subr.mxu0 0.0
  %331 = vmatpush1.msra.mxu0 0.0
  %332 = vmatprep.subr.mxu0 0.0
  %333 = vmatpush1.msra.mxu0 0.0
  %334 = vmatprep.subr.mxu0 0.0
  %335 = vmatpush1.msra.mxu0 0.0
  %336 = vmatprep.subr.mxu0 0.0
  %337 = vmatpush1.msra.mxu0 0.0
  %338 = vmatprep.subr.mxu0 0.0
  %339 = vmatpush1.msra.mxu0 0.0
  %340 = vmatprep.mubr.f32.mxu0 0.0
  %341 = vmatmul.mubr.f32.gmra.mrb[0].mxu0 %v274
  %v342 = vpop.f32.mrb[0].mxu0
  %v343 = vadd.f32 0.0, %v342
  %v344 = vpop.f32.mrb[0].mxu0
  %345 = vdwg.mxu0
  %v346 = vmul.f32 %v266, %v343
  %v347 = vrot.slane %v346, 4
  %v348 = vadd.f32 %v346, %v347
  %v349 = vrot.slane %v348, 2
  %v350 = vadd.f32 %v348, %v349
  %v351 = vrot.slane %v350, 1
  %v352 = vadd.f32 %v350, %v351
  %v353 = vadd.f32 %v352, 6.4e-11
  %v354 = vrcp.pop %v353
  %v355 = vmul.f32 1.0, %v354
  %v356 = vadd.f32 %v346, 8e-12
  %v357 = vmul.f32 %v356, %v355
  %s358 = scalar_lea.vmem %s5, 8
  %359 = vst [vmem:[%s358] sm:$0xff] %v357
  %v360 = vlog2.pop %v353
  %v361 = vmul.f32 %v360, 0.6931472
  %s362 = scalar_lea.vmem %s3, 16
  %v363 = vld [vmem:[%s362] sm:$0xff]
  %v365 = vsel %vm30, %v363, 0
  %367 = vmatprep.subr.mxu0 0.0
  %368 = vmatpush1.msra.mxu0 %v28
  %369 = vmatprep.subr.mxu0 0.0
  %370 = vmatpush1.msra.mxu0 0.0
  %371 = vmatprep.subr.mxu0 0.0
  %372 = vmatpush1.msra.mxu0 0.0
  %373 = vmatprep.subr.mxu0 0.0
  %374 = vmatpush1.msra.mxu0 0.0
  %375 = vmatprep.subr.mxu0 0.0
  %376 = vmatpush1.msra.mxu0 0.0
  %377 = vmatprep.subr.mxu0 0.0
  %378 = vmatpush1.msra.mxu0 0.0
  %379 = vmatprep.subr.mxu0 0.0
  %380 = vmatpush1.msra.mxu0 0.0
  %381 = vmatprep.subr.mxu0 0.0
  %382 = vmatpush1.msra.mxu0 0.0
  %383 = vmatprep.subr.mxu0 0.0
  %384 = vmatpush1.msra.mxu0 0.0
  %385 = vmatprep.subr.mxu0 0.0
  %386 = vmatpush1.msra.mxu0 0.0
  %387 = vmatprep.subr.mxu0 0.0
  %388 = vmatpush1.msra.mxu0 0.0
  %389 = vmatprep.subr.mxu0 0.0
  %390 = vmatpush1.msra.mxu0 0.0
  %391 = vmatprep.subr.mxu0 0.0
  %392 = vmatpush1.msra.mxu0 0.0
  %393 = vmatprep.subr.mxu0 0.0
  %394 = vmatpush1.msra.mxu0 0.0
  %395 = vmatprep.subr.mxu0 0.0
  %396 = vmatpush1.msra.mxu0 0.0
  %397 = vmatprep.subr.mxu0 0.0
  %398 = vmatpush1.msra.mxu0 0.0
  %399 = vmatprep.subr.mxu0 0.0
  %400 = vmatpush1.msra.mxu0 0.0
  %401 = vmatprep.subr.mxu0 0.0
  %402 = vmatpush1.msra.mxu0 0.0
  %403 = vmatprep.subr.mxu0 0.0
  %404 = vmatpush1.msra.mxu0 0.0
  %405 = vmatprep.subr.mxu0 0.0
  %406 = vmatpush1.msra.mxu0 0.0
  %407 = vmatprep.subr.mxu0 0.0
  %408 = vmatpush1.msra.mxu0 0.0
  %409 = vmatprep.subr.mxu0 0.0
  %410 = vmatpush1.msra.mxu0 0.0
  %411 = vmatprep.subr.mxu0 0.0
  %412 = vmatpush1.msra.mxu0 0.0
  %413 = vmatprep.subr.mxu0 0.0
  %414 = vmatpush1.msra.mxu0 0.0
  %415 = vmatprep.subr.mxu0 0.0
  %416 = vmatpush1.msra.mxu0 0.0
  %417 = vmatprep.subr.mxu0 0.0
  %418 = vmatpush1.msra.mxu0 0.0
  %419 = vmatprep.subr.mxu0 0.0
  %420 = vmatpush1.msra.mxu0 0.0
  %421 = vmatprep.subr.mxu0 0.0
  %422 = vmatpush1.msra.mxu0 0.0
  %423 = vmatprep.subr.mxu0 0.0
  %424 = vmatpush1.msra.mxu0 0.0
  %425 = vmatprep.subr.mxu0 0.0
  %426 = vmatpush1.msra.mxu0 0.0
  %427 = vmatprep.subr.mxu0 0.0
  %428 = vmatpush1.msra.mxu0 0.0
  %429 = vmatprep.subr.mxu0 0.0
  %430 = vmatpush1.msra.mxu0 0.0
  %431 = vmatprep.mubr.f32.mxu0 0.0
  %432 = vmatmul.mubr.f32.gmra.mrb[0].mxu0 %v365
  %v433 = vpop.f32.mrb[0].mxu0
  %v434 = vadd.f32 0.0, %v433
  %v435 = vpop.f32.mrb[0].mxu0
  %436 = vdwg.mxu0
  %s437 = scalar_lea.vmem %s2, 16
  %v438 = vld [vmem:[%s437] sm:$0xff]
  %s439 = scalar_lea.vmem %s1, 16
  %v440 = vld [vmem:[%s439] sm:$0xff]
  %v442 = vsel %vm30, %v438, 0
  %444 = vmatprep.subr.mxu0 0.0
  %445 = vmatpush1.msra.mxu0 %v440
  %446 = vmatprep.subr.mxu0 0.0
  %447 = vmatpush1.msra.mxu0 0.0
  %448 = vmatprep.subr.mxu0 0.0
  %449 = vmatpush1.msra.mxu0 0.0
  %450 = vmatprep.subr.mxu0 0.0
  %451 = vmatpush1.msra.mxu0 0.0
  %452 = vmatprep.subr.mxu0 0.0
  %453 = vmatpush1.msra.mxu0 0.0
  %454 = vmatprep.subr.mxu0 0.0
  %455 = vmatpush1.msra.mxu0 0.0
  %456 = vmatprep.subr.mxu0 0.0
  %457 = vmatpush1.msra.mxu0 0.0
  %458 = vmatprep.subr.mxu0 0.0
  %459 = vmatpush1.msra.mxu0 0.0
  %460 = vmatprep.subr.mxu0 0.0
  %461 = vmatpush1.msra.mxu0 0.0
  %462 = vmatprep.subr.mxu0 0.0
  %463 = vmatpush1.msra.mxu0 0.0
  %464 = vmatprep.subr.mxu0 0.0
  %465 = vmatpush1.msra.mxu0 0.0
  %466 = vmatprep.subr.mxu0 0.0
  %467 = vmatpush1.msra.mxu0 0.0
  %468 = vmatprep.subr.mxu0 0.0
  %469 = vmatpush1.msra.mxu0 0.0
  %470 = vmatprep.subr.mxu0 0.0
  %471 = vmatpush1.msra.mxu0 0.0
  %472 = vmatprep.subr.mxu0 0.0
  %473 = vmatpush1.msra.mxu0 0.0
  %474 = vmatprep.subr.mxu0 0.0
  %475 = vmatpush1.msra.mxu0 0.0
  %476 = vmatprep.subr.mxu0 0.0
  %477 = vmatpush1.msra.mxu0 0.0
  %478 = vmatprep.subr.mxu0 0.0
  %479 = vmatpush1.msra.mxu0 0.0
  %480 = vmatprep.subr.mxu0 0.0
  %481 = vmatpush1.msra.mxu0 0.0
  %482 = vmatprep.subr.mxu0 0.0
  %483 = vmatpush1.msra.mxu0 0.0
  %484 = vmatprep.subr.mxu0 0.0
  %485 = vmatpush1.msra.mxu0 0.0
  %486 = vmatprep.subr.mxu0 0.0
  %487 = vmatpush1.msra.mxu0 0.0
  %488 = vmatprep.subr.mxu0 0.0
  %489 = vmatpush1.msra.mxu0 0.0
  %490 = vmatprep.subr.mxu0 0.0
  %491 = vmatpush1.msra.mxu0 0.0
  %492 = vmatprep.subr.mxu0 0.0
  %493 = vmatpush1.msra.mxu0 0.0
  %494 = vmatprep.subr.mxu0 0.0
  %495 = vmatpush1.msra.mxu0 0.0
  %496 = vmatprep.subr.mxu0 0.0
  %497 = vmatpush1.msra.mxu0 0.0
  %498 = vmatprep.subr.mxu0 0.0
  %499 = vmatpush1.msra.mxu0 0.0
  %500 = vmatprep.subr.mxu0 0.0
  %501 = vmatpush1.msra.mxu0 0.0
  %502 = vmatprep.subr.mxu0 0.0
  %503 = vmatpush1.msra.mxu0 0.0
  %504 = vmatprep.subr.mxu0 0.0
  %505 = vmatpush1.msra.mxu0 0.0
  %506 = vmatprep.subr.mxu0 0.0
  %507 = vmatpush1.msra.mxu0 0.0
  %508 = vmatprep.mubr.f32.mxu0 0.0
  %509 = vmatmul.mubr.f32.gmra.mrb[0].mxu0 %v442
  %v510 = vpop.f32.mrb[0].mxu0
  %v511 = vadd.f32 0.0, %v510
  %v512 = vpop.f32.mrb[0].mxu0
  %513 = vdwg.mxu0
  %v514 = vmul.f32 %v434, %v511
  %v515 = vrot.slane %v514, 4
  %v516 = vadd.f32 %v514, %v515
  %v517 = vrot.slane %v516, 2
  %v518 = vadd.f32 %v516, %v517
  %v519 = vrot.slane %v518, 1
  %v520 = vadd.f32 %v518, %v519
  %v521 = vadd.f32 %v520, 6.4e-11
  %v522 = vrcp.pop %v521
  %v523 = vmul.f32 1.0, %v522
  %v524 = vadd.f32 %v514, 8e-12
  %v525 = vmul.f32 %v524, %v523
  %s526 = scalar_lea.vmem %s5, 16
  %527 = vst [vmem:[%s526] sm:$0xff] %v525
  %v528 = vlog2.pop %v521
  %v529 = vmul.f32 %v528, 0.6931472
  %s530 = scalar_lea.vmem %s3, 24
  %v531 = vld [vmem:[%s530] sm:$0xff]
  %v533 = vsel %vm30, %v531, 0
  %535 = vmatprep.subr.mxu0 0.0
  %536 = vmatpush1.msra.mxu0 %v28
  %537 = vmatprep.subr.mxu0 0.0
  %538 = vmatpush1.msra.mxu0 0.0
  %539 = vmatprep.subr.mxu0 0.0
  %540 = vmatpush1.msra.mxu0 0.0
  %541 = vmatprep.subr.mxu0 0.0
  %542 = vmatpush1.msra.mxu0 0.0
  %543 = vmatprep.subr.mxu0 0.0
  %544 = vmatpush1.msra.mxu0 0.0
  %545 = vmatprep.subr.mxu0 0.0
  %546 = vmatpush1.msra.mxu0 0.0
  %547 = vmatprep.subr.mxu0 0.0
  %548 = vmatpush1.msra.mxu0 0.0
  %549 = vmatprep.subr.mxu0 0.0
  %550 = vmatpush1.msra.mxu0 0.0
  %551 = vmatprep.subr.mxu0 0.0
  %552 = vmatpush1.msra.mxu0 0.0
  %553 = vmatprep.subr.mxu0 0.0
  %554 = vmatpush1.msra.mxu0 0.0
  %555 = vmatprep.subr.mxu0 0.0
  %556 = vmatpush1.msra.mxu0 0.0
  %557 = vmatprep.subr.mxu0 0.0
  %558 = vmatpush1.msra.mxu0 0.0
  %559 = vmatprep.subr.mxu0 0.0
  %560 = vmatpush1.msra.mxu0 0.0
  %561 = vmatprep.subr.mxu0 0.0
  %562 = vmatpush1.msra.mxu0 0.0
  %563 = vmatprep.subr.mxu0 0.0
  %564 = vmatpush1.msra.mxu0 0.0
  %565 = vmatprep.subr.mxu0 0.0
  %566 = vmatpush1.msra.mxu0 0.0
  %567 = vmatprep.subr.mxu0 0.0
  %568 = vmatpush1.msra.mxu0 0.0
  %569 = vmatprep.subr.mxu0 0.0
  %570 = vmatpush1.msra.mxu0 0.0
  %571 = vmatprep.subr.mxu0 0.0
  %572 = vmatpush1.msra.mxu0 0.0
  %573 = vmatprep.subr.mxu0 0.0
  %574 = vmatpush1.msra.mxu0 0.0
  %575 = vmatprep.subr.mxu0 0.0
  %576 = vmatpush1.msra.mxu0 0.0
  %577 = vmatprep.subr.mxu0 0.0
  %578 = vmatpush1.msra.mxu0 0.0
  %579 = vmatprep.subr.mxu0 0.0
  %580 = vmatpush1.msra.mxu0 0.0
  %581 = vmatprep.subr.mxu0 0.0
  %582 = vmatpush1.msra.mxu0 0.0
  %583 = vmatprep.subr.mxu0 0.0
  %584 = vmatpush1.msra.mxu0 0.0
  %585 = vmatprep.subr.mxu0 0.0
  %586 = vmatpush1.msra.mxu0 0.0
  %587 = vmatprep.subr.mxu0 0.0
  %588 = vmatpush1.msra.mxu0 0.0
  %589 = vmatprep.subr.mxu0 0.0
  %590 = vmatpush1.msra.mxu0 0.0
  %591 = vmatprep.subr.mxu0 0.0
  %592 = vmatpush1.msra.mxu0 0.0
  %593 = vmatprep.subr.mxu0 0.0
  %594 = vmatpush1.msra.mxu0 0.0
  %595 = vmatprep.subr.mxu0 0.0
  %596 = vmatpush1.msra.mxu0 0.0
  %597 = vmatprep.subr.mxu0 0.0
  %598 = vmatpush1.msra.mxu0 0.0
  %599 = vmatprep.mubr.f32.mxu0 0.0
  %600 = vmatmul.mubr.f32.gmra.mrb[0].mxu0 %v533
  %v601 = vpop.f32.mrb[0].mxu0
  %v602 = vadd.f32 0.0, %v601
  %v603 = vpop.f32.mrb[0].mxu0
  %604 = vdwg.mxu0
  %s605 = scalar_lea.vmem %s2, 24
  %v606 = vld [vmem:[%s605] sm:$0xff]
  %s607 = scalar_lea.vmem %s1, 24
  %v608 = vld [vmem:[%s607] sm:$0xff]
  %v610 = vsel %vm30, %v606, 0
  %612 = vmatprep.subr.mxu0 0.0
  %613 = vmatpush1.msra.mxu0 %v608
  %614 = vmatprep.subr.mxu0 0.0
  %615 = vmatpush1.msra.mxu0 0.0
  %616 = vmatprep.subr.mxu0 0.0
  %617 = vmatpush1.msra.mxu0 0.0
  %618 = vmatprep.subr.mxu0 0.0
  %619 = vmatpush1.msra.mxu0 0.0
  %620 = vmatprep.subr.mxu0 0.0
  %621 = vmatpush1.msra.mxu0 0.0
  %622 = vmatprep.subr.mxu0 0.0
  %623 = vmatpush1.msra.mxu0 0.0
  %624 = vmatprep.subr.mxu0 0.0
  %625 = vmatpush1.msra.mxu0 0.0
  %626 = vmatprep.subr.mxu0 0.0
  %627 = vmatpush1.msra.mxu0 0.0
  %628 = vmatprep.subr.mxu0 0.0
  %629 = vmatpush1.msra.mxu0 0.0
  %630 = vmatprep.subr.mxu0 0.0
  %631 = vmatpush1.msra.mxu0 0.0
  %632 = vmatprep.subr.mxu0 0.0
  %633 = vmatpush1.msra.mxu0 0.0
  %634 = vmatprep.subr.mxu0 0.0
  %635 = vmatpush1.msra.mxu0 0.0
  %636 = vmatprep.subr.mxu0 0.0
  %637 = vmatpush1.msra.mxu0 0.0
  %638 = vmatprep.subr.mxu0 0.0
  %639 = vmatpush1.msra.mxu0 0.0
  %640 = vmatprep.subr.mxu0 0.0
  %641 = vmatpush1.msra.mxu0 0.0
  %642 = vmatprep.subr.mxu0 0.0
  %643 = vmatpush1.msra.mxu0 0.0
  %644 = vmatprep.subr.mxu0 0.0
  %645 = vmatpush1.msra.mxu0 0.0
  %646 = vmatprep.subr.mxu0 0.0
  %647 = vmatpush1.msra.mxu0 0.0
  %648 = vmatprep.subr.mxu0 0.0
  %649 = vmatpush1.msra.mxu0 0.0
  %650 = vmatprep.subr.mxu0 0.0
  %651 = vmatpush1.msra.mxu0 0.0
  %652 = vmatprep.subr.mxu0 0.0
  %653 = vmatpush1.msra.mxu0 0.0
  %654 = vmatprep.subr.mxu0 0.0
  %655 = vmatpush1.msra.mxu0 0.0
  %656 = vmatprep.subr.mxu0 0.0
  %657 = vmatpush1.msra.mxu0 0.0
  %658 = vmatprep.subr.mxu0 0.0
  %659 = vmatpush1.msra.mxu0 0.0
  %660 = vmatprep.subr.mxu0 0.0
  %661 = vmatpush1.msra.mxu0 0.0
  %662 = vmatprep.subr.mxu0 0.0
  %663 = vmatpush1.msra.mxu0 0.0
  %664 = vmatprep.subr.mxu0 0.0
  %665 = vmatpush1.msra.mxu0 0.0
  %666 = vmatprep.subr.mxu0 0.0
  %667 = vmatpush1.msra.mxu0 0.0
  %668 = vmatprep.subr.mxu0 0.0
  %669 = vmatpush1.msra.mxu0 0.0
  %670 = vmatprep.subr.mxu0 0.0
  %671 = vmatpush1.msra.mxu0 0.0
  %672 = vmatprep.subr.mxu0 0.0
  %673 = vmatpush1.msra.mxu0 0.0
  %674 = vmatprep.subr.mxu0 0.0
  %675 = vmatpush1.msra.mxu0 0.0
  %676 = vmatprep.mubr.f32.mxu0 0.0
  %677 = vmatmul.mubr.f32.gmra.mrb[0].mxu0 %v610
  %v678 = vpop.f32.mrb[0].mxu0
  %v679 = vadd.f32 0.0, %v678
  %v680 = vpop.f32.mrb[0].mxu0
  %681 = vdwg.mxu0
  %v682 = vmul.f32 %v602, %v679
  %v683 = vrot.slane %v682, 4
  %v684 = vadd.f32 %v682, %v683
  %v685 = vrot.slane %v684, 2
  %v686 = vadd.f32 %v684, %v685
  %v687 = vrot.slane %v686, 1
  %v688 = vadd.f32 %v686, %v687
  %v689 = vadd.f32 %v688, 6.4e-11
  %v690 = vrcp.pop %v689
  %v691 = vmul.f32 1.0, %v690
  %v692 = vadd.f32 %v682, 8e-12
  %v693 = vmul.f32 %v692, %v691
  %s694 = scalar_lea.vmem %s5, 24
  %695 = vst [vmem:[%s694] sm:$0xff] %v693
  %v696 = vlog2.pop %v689
  %v697 = vmul.f32 %v696, 0.6931472
  %vm698 = vcmask 1040384
  %v699 = vsel %vm698, %v193, %v361
  %vm700 = vcmask 1041408
  %v701 = vsel %vm700, %v699, %v529
  %vm702 = vcmask 1042432
  %v703 = vsel %vm702, %v701, %v697
  %704 = vst [vmem:[%s4] sm:$0xf] %v703
  // Predicated region
  $region18: #{cgmm_layer_forward.1} parent=0 // pred_check
    _
  $region19: #{cgmm_layer_forward.1} parent=0 // pred_check_branch
    %706 = sbr.rel (0) target = $region21
  $region20: #{cgmm_layer_forward.1} parent=0 // pred_region
    _
  $region21: #{cgmm_layer_forward.1} parent=0 // pred_fallthru
    _
  // Predicated region
  $region22: #{cgmm_layer_forward.1} parent=0 // pred_check
    _
  $region23: #{cgmm_layer_forward.1} parent=0 // pred_check_branch
    %708 = sbr.rel (0) target = $region25
  $region24: #{cgmm_layer_forward.1} parent=0 // pred_region
    _
  $region25: #{cgmm_layer_forward.1} parent=0 // pred_fallthru
    _
  // Predicated region
  $region26: #{cgmm_layer_forward.1} parent=0 // pred_check
    _
  $region27: #{cgmm_layer_forward.1} parent=0 // pred_check_branch
    %710 = sbr.rel (0) target = $region29
  $region28: #{cgmm_layer_forward.1} parent=0 // pred_region
    _
  $region29: #{cgmm_layer_forward.1} parent=0 // pred_fallthru
    _
  // Predicated region
  $region30: #{cgmm_layer_forward.1} parent=0 // pred_check
    _
  $region31: #{cgmm_layer_forward.1} parent=0 // pred_check_branch
    %712 = sbr.rel (0) target = $region33
  $region32: #{cgmm_layer_forward.1} parent=0 // pred_region
    _
  $region33: #{cgmm_layer_forward.1} parent=0 // pred_fallthru
    _

</llo_original>
